<compile_context>
chip_gen: v7x
topology: tpu7x:2x2x1
jax: 0.10.0
libtpu: 0.0.40
codegen_flags: <defaults>
</compile_context>

<pallas_src>
import jax
import jax.numpy as jnp
from jax.experimental import pallas as pl
from jax.experimental.pallas import tpu as pltpu


def _awl_kernel(params_ref, losses_ref, out_ref):
    # params_ref, losses_ref: (1, num) f32 in VMEM.
    # out_ref: (1, 1) f32 in SMEM (scalar result).
    p = params_ref[...]                    # (1, num)
    l = losses_ref[...]                    # (1, num)
    p2 = p * p
    # 0.5 / p^2 * loss + log(1 + p^2); log1p for accuracy when params shrink.
    term = 0.5 * l / p2 + jnp.log1p(p2)
    out_ref[0, 0] = jnp.sum(term)


def _awl_forward_pallas(params, losses):
    params = jnp.asarray(params, jnp.float32)
    losses = jnp.asarray(losses, jnp.float32)
    num = params.shape[0]
    assert losses.shape == (num,), "losses must be a (num,) array matching params"

    out = pl.pallas_call(
        _awl_kernel,
        out_shape=jax.ShapeDtypeStruct((1, 1), jnp.float32),
        in_specs=[
            pl.BlockSpec(memory_space=pltpu.MemorySpace.VMEM),
            pl.BlockSpec(memory_space=pltpu.MemorySpace.VMEM),
        ],
        out_specs=pl.BlockSpec(memory_space=pltpu.MemorySpace.SMEM),
        cost_estimate=pl.CostEstimate(
            flops=6 * num, transcendentals=2 * num, bytes_accessed=12 * num
        ),
    )(params.reshape(1, num), losses.reshape(1, num))
    return out[0, 0]


# --- custom_vjp: pallas_call has no autodiff rule; backward is closed-form jnp ---

@jax.custom_vjp
def automatic_weighted_loss(params, losses):
    """params: (num,) f32 learnable weights; losses: (num,) f32 per-task scalar losses.

    Returns the scalar weighted loss sum (f32).
    """
    return _awl_forward_pallas(params, losses)


def _awl_fwd(params, losses):
    params = jnp.asarray(params, jnp.float32)
    losses = jnp.asarray(losses, jnp.float32)
    return _awl_forward_pallas(params, losses), (params, losses)


def _awl_bwd(residuals, g):
    params, losses = residuals
    p2 = params * params
    # d/dp_i = -loss_i / p_i^3 + 2 p_i / (1 + p_i^2);  d/dloss_i = 0.5 / p_i^2
    d_params = g * (-losses / (p2 * params) + 2.0 * params / (1.0 + p2))
    d_losses = g * (0.5 / p2)
    return d_params, d_losses


automatic_weighted_loss.defvjp(_awl_fwd, _awl_bwd)


if __name__ == "__main__":
    num = 2
    # Matches torch.ones(num) parameter init.
    params = jnp.ones((num,), dtype=jnp.float32)

    # Deterministic example scalar losses, stacked into one (num,) array.
    key = jax.random.PRNGKey(0)
    k1, k2 = jax.random.split(key)
    loss1 = jax.random.uniform(k1, (), dtype=jnp.float32) * 2.0
    loss2 = jax.random.uniform(k2, (), dtype=jnp.float32) * 3.0
    losses = jnp.stack([loss1, loss2])

    # Forward.
    result = jax.block_until_ready(automatic_weighted_loss(params, losses))

    # Pure-JAX forward reference (matches the PyTorch formula).
    def ref_fn(p, l):
        return jnp.sum(0.5 / p**2 * l + jnp.log(1.0 + p**2))

    ref = ref_fn(params, losses)
    assert jnp.allclose(result, ref, rtol=1e-4, atol=1e-4), (result, ref)

    # Gradient sanity check (custom_vjp backward vs autodiff of the jnp reference).
    grad_kernel = jax.block_until_ready(
        jax.grad(automatic_weighted_loss, argnums=0)(params, losses)
    )
    grad_ref = jax.grad(ref_fn, argnums=0)(params, losses)
    assert jnp.allclose(grad_kernel, grad_ref, rtol=1e-4, atol=1e-4), (
        grad_kernel,
        grad_ref,
    )

    print("KERNEL_OK")
</pallas_src>

<mosaic_0001>
module attributes {stable_mosaic.version = 11 : i64} {
  func.func @_awl_kernel(%arg0: memref<1x2xf32, #tpu.memory_space<vmem>>, %arg1: memref<1x2xf32, #tpu.memory_space<vmem>>, %arg2: memref<1x1xf32, #tpu.memory_space<smem>>) attributes {dimension_semantics = [], scalar_prefetch = 0 : i64, scratch_operands = 0 : i64, tpu.core_type = #tpu.core_type<tc>} {
    %c0 = arith.constant 0 : index
    %c0_0 = arith.constant 0 : index
    %0 = vector.load %arg0[%c0, %c0_0] : memref<1x2xf32, #tpu.memory_space<vmem>>, vector<1x2xf32>
    %c0_1 = arith.constant 0 : index
    %c0_2 = arith.constant 0 : index
    %1 = vector.load %arg1[%c0_1, %c0_2] : memref<1x2xf32, #tpu.memory_space<vmem>>, vector<1x2xf32>
    %2 = arith.mulf %0, %0 : vector<1x2xf32>
    %cst = arith.constant 5.000000e-01 : f32
    %3 = vector.broadcast %cst : f32 to vector<1x2xf32>
    %4 = arith.mulf %3, %1 : vector<1x2xf32>
    %5 = arith.divf %4, %2 : vector<1x2xf32>
    %6 = math.log1p %2 : vector<1x2xf32>
    %7 = arith.addf %5, %6 : vector<1x2xf32>
    %8 = vector.shape_cast %7 : vector<1x2xf32> to vector<1x1x2xf32>
    %cst_3 = arith.constant dense<0.000000e+00> : vector<1xf32>
    %9 = vector.multi_reduction <add>, %8, %cst_3 [1, 2] : vector<1x1x2xf32> to vector<1xf32>
    %10 = vector.shape_cast %9 : vector<1xf32> to vector<1x1x1xf32>
    %11 = vector.extract %10[0, 0, 0] : f32 from vector<1x1x1xf32>
    %c0_4 = arith.constant 0 : index
    %c0_5 = arith.constant 0 : index
    %12 = memref.load %arg2[%c0_4, %c0_5] : memref<1x1xf32, #tpu.memory_space<smem>>
    memref.store %11, %arg2[%c0_4, %c0_5] : memref<1x1xf32, #tpu.memory_space<smem>>
    return
  }
}

</mosaic_0001>

<llo_original>
// kernel: tpu_custom_call.1
$region0: #{tpu_custom_call.1}
  #allocation0 [shape = 'u32[]', space=smem, size = 0x4, offset = 0x4, fixed_abs, tag = 'smem constant byte address 0x4 - core index']
  #allocation1 [shape = 'u32[144,128]{1,0:T(1,128)}', space=vmem, size = 0x12000, scoped, tag = 'internal scratch']
  %s0 = inlined_call_operand.hbm [shape: f32[1,2], index: 0, kind: input, shape index: {}]
  %s1 = inlined_call_operand.vmem [shape: f32[1,2], index: 1, kind: input, shape index: {}]
  %s2 = inlined_call_operand.hbm [shape: f32[1,1], index: 2, kind: output, shape index: {}]
  %s3 = sld [smem:[#allocation0]]
  $region22: #{tpu_custom_call.1} parent=0
    _
  %s5 = ssub.s32 1, %s3
  %s6 = scalar_select 0, %s5, %s3
  $region1: #{tpu_custom_call.1} parent=0
    #allocation2 [shape = 'u8[512]{0}', space=vmem, size = 0x400, scoped, tag = 'input window, operand 0, single buffered']
    #allocation3 [shape = 's32[1]{0}', space=sflag, size = 0x4, scoped, tag = 'scoped memory for tpu_custom_call.1']
    #allocation4 [shape = 's32[1]{0}', space=sflag, size = 0x4, scoped, tag = 'scoped memory for tpu_custom_call.1']
    #allocation5 [shape = 'u8[512]{0}', space=smem, size = 0x200, scoped, tag = 'output window, operand 0, single buffered']
    %7 = vsyncpa [#allocation3], 0
    %8 = vsyncpa [#allocation4], 0
    // Predicated region
    $region2: #{tpu_custom_call.1} parent=1 // pred_check
      _
    $region3: #{tpu_custom_call.1} parent=1 // pred_check_branch
      %10 = sbr.rel (0) target = $region5
    $region4: #{tpu_custom_call.1} parent=1 // pred_region
      %s12 = ssub.s32 16, 16
      %13 = vsyncadd [#allocation3], %s12
      %s15 = sshll.u32 [#allocation2], 4
      %s16 = int_to_ptr.vmem [resolvable:$true] %s15
      %18 = dma.hbm_to_vmem [thread:$0]  %s0, 16, %s16, [#allocation3]
    $region5: #{tpu_custom_call.1} parent=1 // pred_fallthru
      _
    // Predicated region
    $region6: #{tpu_custom_call.1} parent=1 // pred_check
      _
    $region7: #{tpu_custom_call.1} parent=1 // pred_check_branch
      %20 = sbr.rel (0) target = $region9
    $region8: #{tpu_custom_call.1} parent=1 // pred_region
      _
    $region9: #{tpu_custom_call.1} parent=1 // pred_fallthru
      _
    // Predicated region
    $region10: #{tpu_custom_call.1} parent=1 // pred_check
      _
    $region11: #{tpu_custom_call.1} parent=1 // pred_check_branch
      %22 = sbr.rel (0) target = $region13
    $region12: #{tpu_custom_call.1} parent=1 // pred_region
      %23 = dma.done [#allocation3], 16
    $region13: #{tpu_custom_call.1} parent=1 // pred_fallthru
      _
    %v24 = vld [vmem:[#allocation2] sm:$0x1]
    %v25 = vld [vmem:[%s1] sm:$0x1]
    %v26 = vmul.f32 %v24, %v24
    %v27 = vmul.f32 %v25, 0.5
    %v28 = vrcp.pop %v26
    %v29 = vmul.f32 %v27, %v28
    %v30 = vadd.f32 %v26, 1.0
    %v31 = vlog2.pop %v30
    %v32 = vmul.f32 %v31, 0.6931472
    %v33 = vmul.f32 -0.5, %v26
    %v34 = vadd.f32 %v33, 1.0
    %v35 = vmul.f32 %v34, %v26
    %v36 = vand.u32 2147483647, %v26
    %vm37 = vcmp.lt.f32.partialorder %v36, 0.0004427343
    %v38 = vsel %vm37, %v35, %v32
    %v39 = vadd.f32 %v29, %v38
    %vm40 = vcmask 8192
    %v41 = vsel %vm40, %v39, 0.0
    %42 = vadd.xlane.f32.xlu0 %v41
    %v43 = vpop.xlane.xlu0 %42
    %v44 = vrot.slane %v43, 4
    %v45 = vadd.f32 %v43, %v44
    %v46 = vrot.slane %v45, 2
    %v47 = vadd.f32 %v45, %v46
    %v48 = vrot.slane %v47, 1
    %v49 = vadd.f32 %v47, %v48
    %s50 = vtos %v49
    %s51 = scalar_lea.smem [#allocation5], 0
    %52 = sst [smem:[%s51]] %s50
    // Predicated region
    $region14: #{tpu_custom_call.1} parent=1 // pred_check
      _
    $region15: #{tpu_custom_call.1} parent=1 // pred_check_branch
      %54 = sbr.rel (0) target = $region17
    $region16: #{tpu_custom_call.1} parent=1 // pred_region
      %s56 = ssub.s32 16, 16
      %57 = vsyncadd [#allocation4], %s56
      %60 = dma.smem_to_hbm [#allocation5], 16, %s2, [#allocation4]
    $region17: #{tpu_custom_call.1} parent=1 // pred_fallthru
      _
    // Predicated region
    $region18: #{tpu_custom_call.1} parent=1 // pred_check
      _
    $region19: #{tpu_custom_call.1} parent=1 // pred_check_branch
      %62 = sbr.rel (0) target = $region21
    $region20: #{tpu_custom_call.1} parent=1 // pred_region
      %63 = dma.done [#allocation4], 16
    $region21: #{tpu_custom_call.1} parent=1 // pred_fallthru
      _
    %64 = sfence
    %65 = vsyncpa [#allocation3], 1
    %66 = vsyncpa [#allocation4], 1

</llo_original>
